<compile_context>
chip_gen: v7x
topology: tpu7x:2x2x1
jax: 0.10.0
libtpu: 0.0.40
codegen_flags: <defaults>
</compile_context>

<pallas_src>
import functools

import jax
import jax.numpy as jnp
from jax.experimental import pallas as pl
from jax.experimental.pallas import tpu as pltpu

LN_EPS = 1e-5
MASK_INF = 1e9
VMEM_LIMIT = 48 * 1024 * 1024          # raise scoped VMEM (v5e default is 16 MiB)
EDGE_TILE = 2048                       # rows of the flattened (L*L, E) per step


def _layernorm(x):
    mu = jnp.mean(x, axis=-1, keepdims=True)
    xc = x - mu
    var = jnp.mean(xc * xc, axis=-1, keepdims=True)
    return xc * jax.lax.rsqrt(var + LN_EPS)


# ---------------- Kernel 1: edge-bias projection (LayerNorm + Linear) --------
def edge_bias_kernel(edge_ref, w_ref, b_ref, o_ref):
    # edge_ref: (T, E) tile of flattened edges; w_ref: (H, E); b_ref: (H, 1)
    # o_ref:    (H, T)  -- lane-dense (T lanes), no wrapper transpose needed.
    e = _layernorm(edge_ref[...].astype(jnp.float32))
    o_ref[...] = jax.lax.dot_general(
        w_ref[...], e, (((1,), (1,)), ((), ())),
        preferred_element_type=jnp.float32) + b_ref[...]


# ---------------- Kernel 2: gated multi-head attention, grid=(B, H) ----------
def attn_kernel(node_ref, mask_ref, eb_ref, wp_ref, bp_ref, wo_ref, bo_ref,
                o_ref, x_scr, acc_scr, *, c, cq, gating):
    h = pl.program_id(1)

    # Once per batch element: LayerNorm the node block and zero the accumulator.
    @pl.when(h == 0)
    def _():
        x_scr[...] = _layernorm(node_ref[0].astype(jnp.float32)).astype(jnp.bfloat16)
        acc_scr[...] = jnp.zeros_like(acc_scr)

    x = x_scr[...]                                                    # (L, D) bf16

    # Single fused per-head projection: columns are [q*scale | g | k | v]
    # (weights are head-sliced by the BlockSpec -> total FLOPs stay 1x across H).
    proj = jnp.dot(x, wp_ref[0], preferred_element_type=jnp.float32) + bp_ref[0]
    q = proj[:, :c]                       # c^-0.5 already folded into the weights
    k = proj[:, cq:cq + c]
    v = proj[:, cq + c:]

    logits = jax.lax.dot_general(
        q.astype(jnp.bfloat16), k.astype(jnp.bfloat16),
        (((1,), (1,)), ((), ())), preferred_element_type=jnp.float32)  # (L, L)
    logits = logits + (eb_ref[0] + (mask_ref[...] - 1.0) * MASK_INF)

    m = jnp.max(logits, axis=-1, keepdims=True)
    e = jnp.exp(logits - m)
    attn = e * pl.reciprocal(jnp.sum(e, axis=-1, keepdims=True), approx=True)

    out_h = jnp.dot(attn.astype(jnp.bfloat16), v.astype(jnp.bfloat16),
                    preferred_element_type=jnp.float32)               # (L, c)
    if gating:
        out_h = out_h * jax.nn.sigmoid(proj[:, c:cq])

    # Accumulate this head's contribution to the output projection.
    acc_scr[...] += jnp.dot(out_h.astype(jnp.bfloat16), wo_ref[0],
                            preferred_element_type=jnp.float32)       # (L, D)

    @pl.when(h == pl.num_programs(1) - 1)
    def _():
        o_ref[0] = (acc_scr[...] + bo_ref[...]).astype(o_ref.dtype)


# ---------------- wrapper -----------------------------------------------------
def attention_w_edge_bias(node, edge, mask, params, *, n_head, c, gating):
    B, L, D = node.shape
    E = edge.shape[-1]
    H = n_head
    cq = (1 + int(gating)) * c

    # ---- Kernel 1: tiled, pipelined edge-bias projection -> (H, L*L) f32.
    rows = L * L
    T = rows if rows <= EDGE_TILE else EDGE_TILE
    eb = pl.pallas_call(
        edge_bias_kernel,
        out_shape=jax.ShapeDtypeStruct((H, rows), jnp.float32),
        grid=(pl.cdiv(rows, T),),
        in_specs=[
            pl.BlockSpec((T, E), lambda i: (i, 0)),        # edge rows (streamed)
            pl.BlockSpec((H, E), lambda i: (0, 0)),        # W^T
            pl.BlockSpec((H, 1), lambda i: (0, 0)),        # bias
        ],
        out_specs=pl.BlockSpec((H, T), lambda i: (0, i)),  # lane-dense output
        compiler_params=pltpu.CompilerParams(
            dimension_semantics=("parallel",),
            vmem_limit_bytes=VMEM_LIMIT),
    )(edge.reshape(rows, E), params["w_eb"].T, params["b_eb"].reshape(H, 1))
    edge_bias = eb.reshape(H, L, L)       # free reshape (contiguous split)

    # Head-major weight slabs so the attention kernel streams one head at a
    # time.  qg and kv weights are fused along the output axis into a single
    # per-head projection slab, and the query scale c^-0.5 is folded into the
    # query columns (tiny weight-side ops, amortised over all B*L work).
    scale_cols = jnp.concatenate(
        [jnp.full((c,), float(c) ** -0.5, jnp.float32),
         jnp.ones((cq - c,), jnp.float32)])
    w_qg = params["w_qg"].reshape(D, H, cq).transpose(1, 0, 2) * scale_cols
    b_qg = params["b_qg"].reshape(H, 1, cq) * scale_cols
    w_kv = params["w_kv"].reshape(D, H, 2 * c).transpose(1, 0, 2)
    b_kv = params["b_kv"].reshape(H, 1, 2 * c)
    w_proj = jnp.concatenate([w_qg, w_kv], axis=-1).astype(jnp.bfloat16)  # (H,D,cq+2c)
    b_proj = jnp.concatenate([b_qg, b_kv], axis=-1).astype(jnp.float32)   # (H,1,cq+2c)
    w_o = params["w_o"].reshape(H, c, D).astype(jnp.bfloat16)
    b_o = params["b_o"].reshape(1, D)

    kernel = functools.partial(attn_kernel, c=c, cq=cq, gating=gating)
    out = pl.pallas_call(
        kernel,
        out_shape=jax.ShapeDtypeStruct((B, L, D), node.dtype),
        grid=(B, H),
        in_specs=[
            pl.BlockSpec((1, L, D), lambda b, h: (b, 0, 0)),          # node
            pl.BlockSpec((1, L), lambda b, h: (0, 0)),                # mask
            pl.BlockSpec((1, L, L), lambda b, h: (h, 0, 0)),          # edge bias (per head)
            pl.BlockSpec((1, D, cq + 2 * c), lambda b, h: (h, 0, 0)), # fused qg|kv weights
            pl.BlockSpec((1, 1, cq + 2 * c), lambda b, h: (h, 0, 0)), # fused qg|kv bias
            pl.BlockSpec((1, c, D), lambda b, h: (h, 0, 0)),          # Wo head slab
            pl.BlockSpec((1, D), lambda b, h: (0, 0)),                # bo
        ],
        out_specs=pl.BlockSpec((1, L, D), lambda b, h: (b, 0, 0)),
        scratch_shapes=[
            pltpu.VMEM((L, D), jnp.bfloat16),   # LayerNorm'd node, reused across heads
            pltpu.VMEM((L, D), jnp.float32),    # output accumulator across heads
        ],
        compiler_params=pltpu.CompilerParams(
            dimension_semantics=("parallel", "arbitrary"),
            vmem_limit_bytes=VMEM_LIMIT),
    )(node, mask.reshape(1, L).astype(jnp.float32), edge_bias,
      w_proj, b_proj, w_o, b_o)
    return out


# ---------------- deterministic parameter init (synthetic) --------------------
def init_params(key, d_node, d_edge, n_head, c, gating):
    cq = (1 + int(gating)) * c
    ks = jax.random.split(key, 8)
    s = 0.1
    return {
        # nn.Linear(d_edge, n_head): stored pre-transposed as (d_edge, n_head)
        "w_eb": jax.random.normal(ks[0], (d_edge, n_head), jnp.float32) * s,
        "b_eb": jax.random.normal(ks[1], (n_head,), jnp.float32) * s,
        # qg_weights (d_node, 1, H, cq) flattened to (d_node, H*cq) head-major
        "w_qg": jax.random.normal(ks[2], (d_node, n_head * cq), jnp.float32) * s,
        "b_qg": jax.random.normal(ks[3], (n_head * cq,), jnp.float32) * s,
        # kv_weights (d_node, 1, H, 2c) flattened to (d_node, H*2c)
        "w_kv": jax.random.normal(ks[4], (d_node, n_head * 2 * c), jnp.float32) * s,
        "b_kv": jax.random.normal(ks[5], (n_head * 2 * c,), jnp.float32) * s,
        # o_weights (1, H, c, d_node) flattened to (H*c, d_node); o_bias (d_node,)
        "w_o": jax.random.normal(ks[6], (n_head * c, d_node), jnp.float32) * s,
        "b_o": jax.random.normal(ks[7], (d_node,), jnp.float32) * s,
    }


# ---------------- pure-JAX reference (mirrors torch semantics, f32) -----------
def reference(node, edge, mask, p, *, n_head, c, gating):
    H, D = n_head, node.shape[-1]
    cq = (1 + int(gating)) * c
    xn = _layernorm(node.astype(jnp.float32))
    en = _layernorm(edge.astype(jnp.float32))
    eb = jnp.einsum("ije,eh->hij", en, p["w_eb"]) + p["b_eb"][:, None, None]
    eb = eb + (mask.astype(jnp.float32) - 1.0)[None, None, :] * MASK_INF
    qg = jnp.einsum("bld,dhc->bhlc", xn, p["w_qg"].reshape(D, H, cq)) \
        + p["b_qg"].reshape(H, cq)[None, :, None, :]
    kv = jnp.einsum("bld,dhc->bhlc", xn, p["w_kv"].reshape(D, H, 2 * c)) \
        + p["b_kv"].reshape(H, 2 * c)[None, :, None, :]
    q, g = qg[..., :c], qg[..., c:]
    k, v = kv[..., :c], kv[..., c:]
    logits = jnp.einsum("bhqc,bhkc->bhqk", q * (c ** -0.5), k) + eb[None]
    attn = jax.nn.softmax(logits, axis=-1)
    out = jnp.einsum("bhqk,bhkc->bhqc", attn, v)
    if gating:
        out = out * jax.nn.sigmoid(g)
    return jnp.einsum("bhqc,hcd->bqd", out, p["w_o"].reshape(H, c, D)) + p["b_o"]


if __name__ == "__main__":
    B, L = 2, 8
    d_node, d_edge, n_head, c, gating = 32, 16, 4, 8, True

    key = jax.random.PRNGKey(0)
    k1, k2, kp = jax.random.split(key, 3)
    node = jax.random.normal(k1, (B, L, d_node), jnp.float32)
    edge = jax.random.normal(k2, (L, L, d_edge), jnp.float32)
    mask = (jnp.arange(L) < L - 2).astype(jnp.float32)   # last two positions masked

    params = init_params(kp, d_node, d_edge, n_head, c, gating)

    out = attention_w_edge_bias(node, edge, mask, params,
                                n_head=n_head, c=c, gating=gating)
    out = jax.block_until_ready(out)

    ref = reference(node, edge, mask, params, n_head=n_head, c=c, gating=gating)
    assert out.shape == (B, L, d_node)
    # Kernel uses bf16 MXU operands (f32 accumulation); reference is pure f32.
    assert jnp.allclose(out, ref, atol=3e-2, rtol=3e-2), \
        float(jnp.max(jnp.abs(out - ref)))
    print("KERNEL_OK")
</pallas_src>

<mosaic_0001>
module attributes {stable_mosaic.version = 11 : i64} {
  func.func @edge_bias_kernel(%arg0: i32, %arg1: memref<64x16xf32, #tpu.memory_space<vmem>>, %arg2: memref<4x16xf32, #tpu.memory_space<vmem>>, %arg3: memref<4x1xf32, #tpu.memory_space<vmem>>, %arg4: memref<4x64xf32, #tpu.memory_space<vmem>>) attributes {dimension_semantics = [#tpu.dimension_semantics<parallel>], iteration_bounds = array<i64: 1>, scalar_prefetch = 0 : i64, scratch_operands = 0 : i64, tpu.core_type = #tpu.core_type<tc>, window_params = [{transform_indices = @transform_0, window_bounds = array<i64: 64, 16>}, {pipeline_mode = #tpu.pipeline_mode<synchronous>, transform_indices = @transform_1, window_bounds = array<i64: 4, 16>}, {pipeline_mode = #tpu.pipeline_mode<synchronous>, transform_indices = @transform_2, window_bounds = array<i64: 4, 1>}, {transform_indices = @transform_3, window_bounds = array<i64: 4, 64>}]} {
    %c0 = arith.constant 0 : index
    %c0_0 = arith.constant 0 : index
    %0 = vector.load %arg1[%c0, %c0_0] : memref<64x16xf32, #tpu.memory_space<vmem>>, vector<64x16xf32>
    %cst = arith.constant dense<0.000000e+00> : vector<64xf32>
    %1 = vector.multi_reduction <add>, %0, %cst [1] : vector<64x16xf32> to vector<64xf32>
    %2 = vector.shape_cast %1 : vector<64xf32> to vector<64x1xf32>
    %cst_1 = arith.constant 1.600000e+01 : f32
    %3 = vector.broadcast %cst_1 : f32 to vector<64x1xf32>
    %4 = arith.divf %2, %3 : vector<64x1xf32>
    %5 = vector.broadcast %4 : vector<64x1xf32> to vector<64x16xf32>
    %6 = arith.subf %0, %5 : vector<64x16xf32>
    %7 = arith.mulf %6, %6 : vector<64x16xf32>
    %cst_2 = arith.constant dense<0.000000e+00> : vector<64xf32>
    %8 = vector.multi_reduction <add>, %7, %cst_2 [1] : vector<64x16xf32> to vector<64xf32>
    %9 = vector.shape_cast %8 : vector<64xf32> to vector<64x1xf32>
    %cst_3 = arith.constant 1.600000e+01 : f32
    %10 = vector.broadcast %cst_3 : f32 to vector<64x1xf32>
    %11 = arith.divf %9, %10 : vector<64x1xf32>
    %cst_4 = arith.constant 9.99999974E-6 : f32
    %12 = vector.broadcast %cst_4 : f32 to vector<64x1xf32>
    %13 = arith.addf %11, %12 : vector<64x1xf32>
    %14 = math.rsqrt %13 : vector<64x1xf32>
    %15 = vector.broadcast %14 : vector<64x1xf32> to vector<64x16xf32>
    %16 = arith.mulf %6, %15 : vector<64x16xf32>
    %c0_5 = arith.constant 0 : index
    %c0_6 = arith.constant 0 : index
    %17 = vector.load %arg2[%c0_5, %c0_6] : memref<4x16xf32, #tpu.memory_space<vmem>>, vector<4x16xf32>
    %cst_7 = arith.constant dense<0.000000e+00> : vector<4x64xf32>
    %18 = tpu.matmul %17, %16, %cst_7 {dimension_numbers = #tpu.dot_dimension_numbers<[1], [1], [0], [0], [0, 0, 1, 0], [], []>} : vector<4x16xf32>, vector<64x16xf32>, vector<4x64xf32> -> vector<4x64xf32>
    %c0_8 = arith.constant 0 : index
    %c0_9 = arith.constant 0 : index
    %19 = vector.load %arg3[%c0_8, %c0_9] : memref<4x1xf32, #tpu.memory_space<vmem>>, vector<4x1xf32>
    %20 = vector.broadcast %19 : vector<4x1xf32> to vector<4x64xf32>
    %21 = arith.addf %18, %20 : vector<4x64xf32>
    %c0_10 = arith.constant 0 : index
    %c0_11 = arith.constant 0 : index
    %22 = vector.load %arg4[%c0_10, %c0_11] : memref<4x64xf32, #tpu.memory_space<vmem>>, vector<4x64xf32>
    tpu.vector_store %arg4[%c0_10, %c0_11], %21 {strides = array<i32>} : memref<4x64xf32, #tpu.memory_space<vmem>>, vector<4x64xf32>,
    return
  }
  func.func @transform_0(%arg0: i32) -> (i32, i32) {
    %c0_i32 = arith.constant 0 : i32
    %c0_i32_0 = arith.constant 0 : i32
    return %arg0, %c0_i32 : i32, i32
  }
  func.func @transform_1(%arg0: i32) -> (i32, i32) {
    %c0_i32 = arith.constant 0 : i32
    %c0_i32_0 = arith.constant 0 : i32
    %c0_i32_1 = arith.constant 0 : i32
    return %c0_i32, %c0_i32_0 : i32, i32
  }
  func.func @transform_2(%arg0: i32) -> (i32, i32) {
    %c0_i32 = arith.constant 0 : i32
    %c0_i32_0 = arith.constant 0 : i32
    %c0_i32_1 = arith.constant 0 : i32
    return %c0_i32, %c0_i32_0 : i32, i32
  }
  func.func @transform_3(%arg0: i32) -> (i32, i32) {
    %c0_i32 = arith.constant 0 : i32
    %c0_i32_0 = arith.constant 0 : i32
    return %c0_i32, %arg0 : i32, i32
  }
}

</mosaic_0001>

<llo_original>
// kernel: tpu_custom_call.1
$region0: #{tpu_custom_call.1}
  #allocation0 [shape = 'u32[]', space=smem, size = 0x4, offset = 0x4, fixed_abs, tag = 'smem constant byte address 0x4 - core index']
  #allocation1 [shape = 'u32[144,128]{1,0:T(1,128)}', space=vmem, size = 0x12000, scoped, tag = 'internal scratch']
  %s0 = inlined_call_operand.vmem [shape: f32[64,16], index: 0, kind: input, shape index: {}]
  %s1 = inlined_call_operand.vmem [shape: f32[4,16], index: 1, kind: input, shape index: {}]
  %s2 = inlined_call_operand.vmem [shape: f32[4,1], index: 2, kind: input, shape index: {}]
  %s3 = inlined_call_operand.hbm [shape: f32[4,64], index: 3, kind: output, shape index: {}]
  %s4 = sld [smem:[#allocation0]]
  $region22: #{tpu_custom_call.1} parent=0
    _
  %s6 = ssub.s32 1, %s4
  %s7 = scalar_select 0, %s6, %s4
  $region1: #{tpu_custom_call.1} parent=0
    #allocation2 [shape = 'u8[2048]{0}', space=vmem, size = 0x800, scoped, tag = 'output window, operand 0, single buffered']
    #allocation3 [shape = 's32[1]{0}', space=sflag, size = 0x4, scoped, tag = 'scoped memory for tpu_custom_call.1']
    %8 = vsyncpa [#allocation3], 0
    // Predicated region
    $region2: #{tpu_custom_call.1} parent=1 // pred_check
      _
    $region3: #{tpu_custom_call.1} parent=1 // pred_check_branch
      %10 = sbr.rel (0) target = $region5
    $region4: #{tpu_custom_call.1} parent=1 // pred_region
      _
    $region5: #{tpu_custom_call.1} parent=1 // pred_fallthru
      _
    // Predicated region
    $region6: #{tpu_custom_call.1} parent=1 // pred_check
      _
    $region7: #{tpu_custom_call.1} parent=1 // pred_check_branch
      %12 = sbr.rel (0) target = $region9
    $region8: #{tpu_custom_call.1} parent=1 // pred_region
      _
    $region9: #{tpu_custom_call.1} parent=1 // pred_fallthru
      _
    // Predicated region
    $region10: #{tpu_custom_call.1} parent=1 // pred_check
      _
    $region11: #{tpu_custom_call.1} parent=1 // pred_check_branch
      %14 = sbr.rel (0) target = $region13
    $region12: #{tpu_custom_call.1} parent=1 // pred_region
      _
    $region13: #{tpu_custom_call.1} parent=1 // pred_fallthru
      _
    %v15 = vld [vmem:[%s0] sm:$0xff]
    %v16 = vld [vmem:[%s0 + $0x8] sm:$0xff]
    %v17 = vld [vmem:[%s0 + $0x10] sm:$0xff]
    %v18 = vld [vmem:[%s0 + $0x18] sm:$0xff]
    %v19 = vld [vmem:[%s0 + $0x20] sm:$0xff]
    %v20 = vld [vmem:[%s0 + $0x28] sm:$0xff]
    %v21 = vld [vmem:[%s0 + $0x30] sm:$0xff]
    %v22 = vld [vmem:[%s0 + $0x38] sm:$0xff]
    %vm23 = vcmask 130048
    %v24 = vsel %vm23, %v15, 0.0
    %25 = vadd.xlane.f32.xlu0 %v24
    %v26 = vpop.xlane.xlu0 %25
    %v27 = vsel %vm23, %v16, 0.0
    %28 = vadd.xlane.f32.xlu0 %v27
    %v29 = vpop.xlane.xlu0 %28
    %v30 = vsel %vm23, %v17, 0.0
    %31 = vadd.xlane.f32.xlu0 %v30
    %v32 = vpop.xlane.xlu0 %31
    %v33 = vsel %vm23, %v18, 0.0
    %34 = vadd.xlane.f32.xlu0 %v33
    %v35 = vpop.xlane.xlu0 %34
    %v36 = vsel %vm23, %v19, 0.0
    %37 = vadd.xlane.f32.xlu0 %v36
    %v38 = vpop.xlane.xlu0 %37
    %v39 = vsel %vm23, %v20, 0.0
    %40 = vadd.xlane.f32.xlu0 %v39
    %v41 = vpop.xlane.xlu0 %40
    %v42 = vsel %vm23, %v21, 0.0
    %43 = vadd.xlane.f32.xlu0 %v42
    %v44 = vpop.xlane.xlu0 %43
    %v45 = vsel %vm23, %v22, 0.0
    %46 = vadd.xlane.f32.xlu0 %v45
    %v47 = vpop.xlane.xlu0 %46
    %v48 = vrcp.pop 16.0
    %v49 = vmul.f32 %v26, %v48
    %v50 = vmul.f32 %v29, %v48
    %v51 = vmul.f32 %v32, %v48
    %v52 = vmul.f32 %v35, %v48
    %v53 = vmul.f32 %v38, %v48
    %v54 = vmul.f32 %v41, %v48
    %v55 = vmul.f32 %v44, %v48
    %v56 = vmul.f32 %v47, %v48
    %v57 = vsub.f32 %v15, %v49
    %v58 = vsub.f32 %v16, %v50
    %v59 = vsub.f32 %v17, %v51
    %v60 = vsub.f32 %v18, %v52
    %v61 = vsub.f32 %v19, %v53
    %v62 = vsub.f32 %v20, %v54
    %v63 = vsub.f32 %v21, %v55
    %v64 = vsub.f32 %v22, %v56
    %v65 = vmul.f32 %v57, %v57
    %v66 = vmul.f32 %v58, %v58
    %v67 = vmul.f32 %v59, %v59
    %v68 = vmul.f32 %v60, %v60
    %v69 = vmul.f32 %v61, %v61
    %v70 = vmul.f32 %v62, %v62
    %v71 = vmul.f32 %v63, %v63
    %v72 = vmul.f32 %v64, %v64
    %v73 = vsel %vm23, %v65, 0.0
    %74 = vadd.xlane.f32.xlu0 %v73
    %v75 = vpop.xlane.xlu0 %74
    %v76 = vsel %vm23, %v66, 0.0
    %77 = vadd.xlane.f32.xlu0 %v76
    %v78 = vpop.xlane.xlu0 %77
    %v79 = vsel %vm23, %v67, 0.0
    %80 = vadd.xlane.f32.xlu0 %v79
    %v81 = vpop.xlane.xlu0 %80
    %v82 = vsel %vm23, %v68, 0.0
    %83 = vadd.xlane.f32.xlu0 %v82
    %v84 = vpop.xlane.xlu0 %83
    %v85 = vsel %vm23, %v69, 0.0
    %86 = vadd.xlane.f32.xlu0 %v85
    %v87 = vpop.xlane.xlu0 %86
    %v88 = vsel %vm23, %v70, 0.0
    %89 = vadd.xlane.f32.xlu0 %v88
    %v90 = vpop.xlane.xlu0 %89
    %v91 = vsel %vm23, %v71, 0.0
    %92 = vadd.xlane.f32.xlu0 %v91
    %v93 = vpop.xlane.xlu0 %92
    %v94 = vsel %vm23, %v72, 0.0
    %95 = vadd.xlane.f32.xlu0 %v94
    %v96 = vpop.xlane.xlu0 %95
    %v97 = vmul.f32 %v75, %v48
    %v98 = vmul.f32 %v78, %v48
    %v99 = vmul.f32 %v81, %v48
    %v100 = vmul.f32 %v84, %v48
    %v101 = vmul.f32 %v87, %v48
    %v102 = vmul.f32 %v90, %v48
    %v103 = vmul.f32 %v93, %v48
    %v104 = vmul.f32 %v96, %v48
    %v105 = vadd.f32 %v97, 1e-05
    %v106 = vadd.f32 %v98, 1e-05
    %v107 = vadd.f32 %v99, 1e-05
    %v108 = vadd.f32 %v100, 1e-05
    %v109 = vadd.f32 %v101, 1e-05
    %v110 = vadd.f32 %v102, 1e-05
    %v111 = vadd.f32 %v103, 1e-05
    %v112 = vadd.f32 %v104, 1e-05
    %v113 = vrsqrt.pop %v105
    %v114 = vrsqrt.pop %v106
    %v115 = vrsqrt.pop %v107
    %v116 = vrsqrt.pop %v108
    %v117 = vrsqrt.pop %v109
    %v118 = vrsqrt.pop %v110
    %v119 = vrsqrt.pop %v111
    %v120 = vrsqrt.pop %v112
    %v121 = vmul.f32 %v57, %v113
    %v122 = vmul.f32 %v58, %v114
    %v123 = vmul.f32 %v59, %v115
    %v124 = vmul.f32 %v60, %v116
    %v125 = vmul.f32 %v61, %v117
    %v126 = vmul.f32 %v62, %v118
    %v127 = vmul.f32 %v63, %v119
    %v128 = vmul.f32 %v64, %v120
    %v129 = vld [vmem:[%s1] sm:$0xf]
    %v130 = vld [vmem:[%s2] sm:$0xf]
    %132 = vset.pattern.permute.xlu0 0
    %133 = vperm.xlu0 %132, %v130
    %v134 = vpop.permute.xlu0 %133
    %v137 = vsel %vm23, %v129, 0
    %v140 = vsel %vm23, %v121, 0
    %v143 = vsel %vm23, %v122, 0
    %v146 = vsel %vm23, %v123, 0
    %v149 = vsel %vm23, %v124, 0
    %v152 = vsel %vm23, %v125, 0
    %v155 = vsel %vm23, %v126, 0
    %v158 = vsel %vm23, %v127, 0
    %v161 = vsel %vm23, %v128, 0
    %163 = vmatprep.subr.mxu0 0.0
    %164 = vmatpush1.xpose.msra.mxu0 %v140
    %165 = vmatprep.subr.mxu0 0.0
    %166 = vmatpush1.xpose.msra.mxu0 %v143
    %167 = vmatprep.subr.mxu0 0.0
    %168 = vmatpush1.xpose.msra.mxu0 %v146
    %169 = vmatprep.subr.mxu0 0.0
    %170 = vmatpush1.xpose.msra.mxu0 %v149
    %171 = vmatprep.subr.mxu0 0.0
    %172 = vmatpush1.xpose.msra.mxu0 %v152
    %173 = vmatprep.subr.mxu0 0.0
    %174 = vmatpush1.xpose.msra.mxu0 %v155
    %175 = vmatprep.subr.mxu0 0.0
    %176 = vmatpush1.xpose.msra.mxu0 %v158
    %177 = vmatprep.subr.mxu0 0.0
    %178 = vmatpush1.xpose.msra.mxu0 %v161
    %179 = vmatprep.subr.mxu0 0.0
    %180 = vmatpush1.xpose.msra.mxu0 0.0
    %181 = vmatprep.subr.mxu0 0.0
    %182 = vmatpush1.xpose.msra.mxu0 0.0
    %183 = vmatprep.subr.mxu0 0.0
    %184 = vmatpush1.xpose.msra.mxu0 0.0
    %185 = vmatprep.subr.mxu0 0.0
    %186 = vmatpush1.xpose.msra.mxu0 0.0
    %187 = vmatprep.subr.mxu0 0.0
    %188 = vmatpush1.xpose.msra.mxu0 0.0
    %189 = vmatprep.subr.mxu0 0.0
    %190 = vmatpush1.xpose.msra.mxu0 0.0
    %191 = vmatprep.subr.mxu0 0.0
    %192 = vmatpush1.xpose.msra.mxu0 0.0
    %193 = vmatprep.subr.mxu0 0.0
    %194 = vmatpush1.xpose.msra.mxu0 0.0
    %195 = vmatprep.subr.mxu0 0.0
    %196 = vmatpush1.xpose.msra.mxu0 0.0
    %197 = vmatprep.subr.mxu0 0.0
    %198 = vmatpush1.xpose.msra.mxu0 0.0
    %199 = vmatprep.subr.mxu0 0.0
    %200 = vmatpush1.xpose.msra.mxu0 0.0
    %201 = vmatprep.subr.mxu0 0.0
    %202 = vmatpush1.xpose.msra.mxu0 0.0
    %203 = vmatprep.subr.mxu0 0.0
    %204 = vmatpush1.xpose.msra.mxu0 0.0
    %205 = vmatprep.subr.mxu0 0.0
    %206 = vmatpush1.xpose.msra.mxu0 0.0
    %207 = vmatprep.subr.mxu0 0.0
    %208 = vmatpush1.xpose.msra.mxu0 0.0
    %209 = vmatprep.subr.mxu0 0.0
    %210 = vmatpush1.xpose.msra.mxu0 0.0
    %211 = vmatprep.subr.mxu0 0.0
    %212 = vmatpush1.xpose.msra.mxu0 0.0
    %213 = vmatprep.subr.mxu0 0.0
    %214 = vmatpush1.xpose.msra.mxu0 0.0
    %215 = vmatprep.subr.mxu0 0.0
    %216 = vmatpush1.xpose.msra.mxu0 0.0
    %217 = vmatprep.subr.mxu0 0.0
    %218 = vmatpush1.xpose.msra.mxu0 0.0
    %219 = vmatprep.subr.mxu0 0.0
    %220 = vmatpush1.xpose.msra.mxu0 0.0
    %221 = vmatprep.subr.mxu0 0.0
    %222 = vmatpush1.xpose.msra.mxu0 0.0
    %223 = vmatprep.subr.mxu0 0.0
    %224 = vmatpush1.xpose.msra.mxu0 0.0
    %225 = vmatprep.subr.mxu0 0.0
    %226 = vmatpush1.xpose.msra.mxu0 0.0
    %227 = vmatprep.mubr.f32.mxu0 0.0
    %228 = vmatmul.mubr.f32.gmra.mrb[0].mxu0 %v137
    %v229 = vpop.f32.mrb[0].mxu0
    %v230 = vadd.f32 %v134, %v229
    %v231 = vpop.f32.mrb[0].mxu0
    %232 = vdwg.mxu0
    %vm233 = vcmask 519168
    %234 = vst.msk [vmem:[#allocation2] sm:$0xf] %vm233, %v230
    // Predicated region
    $region14: #{tpu_custom_call.1} parent=1 // pred_check
      _
    $region15: #{tpu_custom_call.1} parent=1 // pred_check_branch
      %236 = sbr.rel (0) target = $region17
    $region16: #{tpu_custom_call.1} parent=1 // pred_region
      %s238 = ssub.s32 64, 64
      %239 = vsyncadd [#allocation3], %s238
      %s241 = sshll.u32 [#allocation2], 4
      %s242 = int_to_ptr.vmem [resolvable:$true] %s241
      %244 = dma.vmem_to_hbm [thread:$0]  %s242, 64, %s3, [#allocation3]
    $region17: #{tpu_custom_call.1} parent=1 // pred_fallthru
      _
    // Predicated region
    $region18: #{tpu_custom_call.1} parent=1 // pred_check
      _
    $region19: #{tpu_custom_call.1} parent=1 // pred_check_branch
      %246 = sbr.rel (0) target = $region21
    $region20: #{tpu_custom_call.1} parent=1 // pred_region
      %247 = dma.done [#allocation3], 64
    $region21: #{tpu_custom_call.1} parent=1 // pred_fallthru
      _
    %248 = vsyncpa [#allocation3], 1

</llo_original>
